<compile_context>
chip_gen: v5e
topology: v5e:2x2
jax: 0.10.0
libtpu: 0.0.40
codegen_flags: <defaults>
</compile_context>

<pallas_src>
import functools

import jax
import jax.numpy as jnp
from jax.experimental import pallas as pl
from jax.experimental.pallas import tpu as pltpu


# ----------------------------------------------------------------------------
# Kernel 1: morphological dilation of the depth map (max over a KxK window).
# ----------------------------------------------------------------------------
def _dilation_kernel(x_ref, *rest, K, pad_lo, pad_hi, row_off, col_off):
    out_ref = rest[-2]
    pad_ref = rest[-1]          # VMEM scratch, persists across grid steps
    halo_refs = rest[:-2]

    x = x_ref[0]                # (tile_h, W)
    th, W = x.shape
    dtype = x.dtype
    neg = (jnp.finfo(dtype).min if jnp.issubdtype(dtype, jnp.floating)
           else jnp.iinfo(dtype).min)

    # Assemble [top halo ; tile ; bottom halo] into a NEG-initialised scratch so
    # every window read below is a plain static slice (no host-side padding).
    # NEG is the neutral element for max -> kornia-like ignore-border behaviour.
    pad_ref[...] = jnp.full(pad_ref.shape, neg, dtype)
    pad_ref[row_off:row_off + th, col_off:col_off + W] = x
    h = 0
    if pad_lo > 0:
        pad_ref[row_off - pad_lo:row_off, col_off:col_off + W] = halo_refs[h][0, 0]
        h += 1
    if pad_hi > 0:
        pad_ref[row_off + th:row_off + th + pad_hi, col_off:col_off + W] = halo_refs[h][0, 0]

    p = pad_ref[...]
    r0 = row_off - pad_lo
    c0 = col_off - pad_lo
    # Separable max: vertical pass (K-1 maxes) then horizontal pass (K-1 maxes).
    v = p[r0:r0 + th, :]
    for dy in range(1, K):
        v = jnp.maximum(v, p[r0 + dy:r0 + dy + th, :])
    out = v[:, c0:c0 + W]
    for dx in range(1, K):
        out = jnp.maximum(out, v[:, c0 + dx:c0 + dx + W])
    out_ref[0] = out


def dilate_depth_pallas(depth, K, max_tile_h=512):
    """Morphological dilation with a KxK ones kernel, 'same' output size."""
    if K is None or K <= 1:
        return depth
    B, C, H, W = depth.shape
    dtype = depth.dtype
    x = depth.reshape(B * C, H, W)
    BC = B * C
    # kornia anchors the window at origin = K // 2 (identical to before for odd K)
    pad_lo = K // 2
    pad_hi = K - 1 - pad_lo
    neg = (jnp.finfo(dtype).min if jnp.issubdtype(dtype, jnp.floating)
           else jnp.iinfo(dtype).min)

    # Row tile: largest divisor of H that is <= max_tile_h and (8 | tile or tile == H).
    tile_h = H
    for cand in range(1, min(H, max_tile_h) + 1):
        if H % cand == 0 and (cand % 8 == 0 or cand == H):
            tile_h = cand
    nt = H // tile_h

    # Tiny per-tile halo rows ((K-1) rows per tile); rows outside the image are
    # NEG so they are neutral for the max.
    def make_halo(row_idx):                                   # (nt, pad)
        valid = (row_idx >= 0) & (row_idx < H)
        gathered = x[:, jnp.clip(row_idx, 0, H - 1), :]        # (BC, nt, pad, W)
        return jnp.where(valid[None, :, :, None], gathered,
                         jnp.full_like(gathered, neg))

    t0 = jnp.arange(nt, dtype=jnp.int32) * tile_h
    inputs = [x]
    in_specs = [pl.BlockSpec((1, tile_h, W), lambda bc, t: (bc, t, 0))]
    if pad_lo > 0:
        idx_top = t0[:, None] - pad_lo + jnp.arange(pad_lo, dtype=jnp.int32)[None, :]
        inputs.append(make_halo(idx_top))
        in_specs.append(pl.BlockSpec((1, 1, pad_lo, W), lambda bc, t: (bc, t, 0, 0)))
    if pad_hi > 0:
        idx_bot = t0[:, None] + tile_h + jnp.arange(pad_hi, dtype=jnp.int32)[None, :]
        inputs.append(make_halo(idx_bot))
        in_specs.append(pl.BlockSpec((1, 1, pad_hi, W), lambda bc, t: (bc, t, 0, 0)))

    # Aligned offsets inside the scratch so every store is sublane/lane aligned.
    row_off = ((pad_lo + 7) // 8) * 8
    col_off = ((pad_lo + 127) // 128) * 128
    scratch = pltpu.VMEM((row_off + tile_h + pad_hi, col_off + W + pad_hi), dtype)

    kern = functools.partial(_dilation_kernel, K=K, pad_lo=pad_lo, pad_hi=pad_hi,
                             row_off=row_off, col_off=col_off)
    out = pl.pallas_call(
        kern,
        out_shape=jax.ShapeDtypeStruct((BC, H, W), dtype),
        grid=(BC, nt),
        in_specs=in_specs,
        out_specs=pl.BlockSpec((1, tile_h, W), lambda bc, t: (bc, t, 0)),
        scratch_shapes=[scratch],
        compiler_params=pltpu.CompilerParams(
            dimension_semantics=("parallel", "parallel"),
            vmem_limit_bytes=48 * 1024 * 1024),
    )(*inputs)
    return out.reshape(B, C, H, W)


# ----------------------------------------------------------------------------
# Kernel 2: _depth_to_3d back-projection (elementwise), batched over B.
#   x3d = d * (x - cx) * (1/fx) ; y3d = d * (y - cy) * (1/fy) ; z3d = d
# ----------------------------------------------------------------------------
def _depth3d_kernel(intr_ref, d_ref, xy_ref, out_ref, *, B):
    # intr_ref: SMEM f32[4*B] = (inv_fx, inv_fy, cx, cy) per batch
    # d_ref: (B, Np) depths, xy_ref: (B, 2, Np) = (x; y), out_ref: (B, 3, Np)
    Np = d_ref.shape[-1]
    row3 = jax.lax.broadcasted_iota(jnp.int32, (3, Np), 0)   # hoisted out of loop
    for b in range(B):
        inv_fx = intr_ref[4 * b + 0]
        inv_fy = intr_ref[4 * b + 1]
        cx = intr_ref[4 * b + 2]
        cy = intr_ref[4 * b + 3]
        d = d_ref[b:b + 1, :]                 # (1, Np)
        xc = xy_ref[b, 0:1, :]                # (1, Np)
        yc = xy_ref[b, 1:2, :]                # (1, Np)
        x3 = d * (xc - cx) * inv_fx
        y3 = d * (yc - cy) * inv_fy
        # single (3, Np) store per batch instead of three 1-row partial stores
        stacked = jnp.where(row3 == 0, jnp.broadcast_to(x3, (3, Np)),
                            jnp.where(row3 == 1, jnp.broadcast_to(y3, (3, Np)),
                                      jnp.broadcast_to(d, (3, Np))))
        out_ref[b] = stacked


def depth_to_3d_pallas(depths, coords, intrinsics):
    """depths: (B, N), coords: (B, N, 2) as (x, y), intrinsics: (B, 3, 3) -> (B, N, 3)."""
    B, N = depths.shape
    Np = ((N + 127) // 128) * 128            # lane-dense keypoint axis
    fx = intrinsics[:, 0, 0]
    fy = intrinsics[:, 1, 1]
    cx = intrinsics[:, 0, 2]
    cy = intrinsics[:, 1, 2]
    # reciprocals precomputed once (scalar work) -> multiplies instead of divides
    intr = jnp.stack([1.0 / fx, 1.0 / fy, cx, cy], axis=-1).reshape(-1).astype(jnp.float32)
    d = jnp.zeros((B, Np), jnp.float32).at[:, :N].set(depths.astype(jnp.float32))
    xy = jnp.zeros((B, 2, Np), jnp.float32).at[:, :, :N].set(
        jnp.swapaxes(coords, 1, 2).astype(jnp.float32))
    out = pl.pallas_call(
        functools.partial(_depth3d_kernel, B=B),
        out_shape=jax.ShapeDtypeStruct((B, 3, Np), jnp.float32),
        in_specs=[
            pl.BlockSpec(memory_space=pltpu.MemorySpace.SMEM),
            pl.BlockSpec(memory_space=pltpu.MemorySpace.VMEM),
            pl.BlockSpec(memory_space=pltpu.MemorySpace.VMEM),
        ],
        out_specs=pl.BlockSpec(memory_space=pltpu.MemorySpace.VMEM),
    )(intr, d, xy)
    return jnp.swapaxes(out[:, :, :N], 1, 2)   # (B, N, 3)


# ----------------------------------------------------------------------------
# Forward pass (mirrors PoseEstimation.forward control flow).
# ----------------------------------------------------------------------------
def pose_estimation_forward(image0, image1, depth1, intrinsics0, intrinsics1,
                            keypoints0, keypoints1, matches, dilate_depth=3):
    # TODO(synk): DISK feature extractor and LightGlue matcher are full neural
    # networks with no single-Pallas-kernel equivalent; deterministic synthetic
    # keypoints / matches are supplied as inputs instead.
    if dilate_depth is not None:
        depth1 = dilate_depth_pallas(depth1, dilate_depth)

    B, _, H, W = depth1.shape
    m0 = jnp.take_along_axis(keypoints0, matches[..., 0:1], axis=1)   # (B, N, 2)
    m1 = jnp.take_along_axis(keypoints1, matches[..., 1:2], axis=1)   # (B, N, 2), (x, y)
    rows = jnp.clip(jnp.round(m1[..., 1]).astype(jnp.int32), 0, H - 1)
    cols = jnp.clip(jnp.round(m1[..., 0]).astype(jnp.int32), 0, W - 1)
    b_idx = jnp.arange(B)[:, None]
    dmap = depth1[:, 0]
    d = dmap[b_idx, rows, cols]                                       # (B, N) gather (glue)
    # TODO(synk): valid_mask (depth > 0) compaction needs dynamic shapes; kept
    # dense since the downstream RANSAC consumer is not translatable anyway.
    pts3d = depth_to_3d_pallas(d, m1, intrinsics1)                    # (B, N, 3)
    # TODO(synk): poselib.estimate_absolute_pose (RANSAC PnP solver) has no
    # Pallas equivalent; returning identity poses of the correct shape/dtype.
    del m0
    poses = jnp.tile(jnp.eye(4, dtype=image0.dtype)[None], (B, 1, 1))
    return poses, pts3d


if __name__ == "__main__":
    key = jax.random.PRNGKey(0)
    B, H, W, N = 2, 16, 16, 8
    k0, k1, k2, k3, k4 = jax.random.split(key, 5)

    image0 = jax.random.uniform(k0, (B, 1, H, W), jnp.float32)
    image1 = jax.random.uniform(k1, (B, 1, H, W), jnp.float32)
    depth1 = jax.random.uniform(k2, (B, 1, H, W), jnp.float32, minval=0.5, maxval=5.0)

    intr = jnp.array([[10.0, 0.0, W / 2.0],
                      [0.0, 10.0, H / 2.0],
                      [0.0, 0.0, 1.0]], jnp.float32)
    intrinsics0 = jnp.stack([intr] * B)
    intrinsics1 = jnp.stack([intr] * B)

    # Deterministic synthetic keypoints (x, y) and 1:1 matches.
    keypoints0 = jax.random.uniform(k3, (B, N, 2), jnp.float32) * (W - 1)
    keypoints1 = jax.random.uniform(k4, (B, N, 2), jnp.float32) * (W - 1)
    matches = jnp.tile(jnp.arange(N, dtype=jnp.int32)[:, None], (1, 2))[None].repeat(B, 0)

    poses, pts3d = pose_estimation_forward(
        image0, image1, depth1, intrinsics0, intrinsics1,
        keypoints0, keypoints1, matches, dilate_depth=3)
    jax.block_until_ready((poses, pts3d))

    assert poses.shape == (B, 4, 4)
    assert pts3d.shape == (B, N, 3)
    print("KERNEL_OK")
</pallas_src>

<mosaic_0001>
module attributes {stable_mosaic.version = 11 : i64} {
  func.func @_dilation_kernel(%arg0: i32, %arg1: i32, %arg2: memref<1x16x16xf32, #tpu.memory_space<vmem>>, %arg3: memref<1x1x1x16xf32, #tpu.memory_space<vmem>>, %arg4: memref<1x1x1x16xf32, #tpu.memory_space<vmem>>, %arg5: memref<1x16x16xf32, #tpu.memory_space<vmem>>, %arg6: memref<25x145xf32, #tpu.memory_space<vmem>>) attributes {dimension_semantics = [#tpu.dimension_semantics<parallel>, #tpu.dimension_semantics<parallel>], iteration_bounds = array<i64: 2, 1>, scalar_prefetch = 0 : i64, scratch_operands = 1 : i64, tpu.core_type = #tpu.core_type<tc>, window_params = [{transform_indices = @transform_0, window_bounds = array<i64: 1, 16, 16>}, {transform_indices = @transform_1, window_bounds = array<i64: 1, 1, 1, 16>}, {transform_indices = @transform_2, window_bounds = array<i64: 1, 1, 1, 16>}, {transform_indices = @transform_3, window_bounds = array<i64: 1, 16, 16>}]} {
    %c0 = arith.constant 0 : index
    %c0_0 = arith.constant 0 : index
    %c0_1 = arith.constant 0 : index
    %0 = vector.load %arg2[%c0, %c0_0, %c0_1] : memref<1x16x16xf32, #tpu.memory_space<vmem>>, vector<1x16x16xf32>
    %1 = vector.shape_cast %0 : vector<1x16x16xf32> to vector<16x16xf32>
    %cst = arith.constant -3.40282347E+38 : f32
    %2 = vector.broadcast %cst : f32 to vector<25x145xf32>
    %c0_2 = arith.constant 0 : index
    %c0_3 = arith.constant 0 : index
    %3 = vector.load %arg6[%c0_2, %c0_3] : memref<25x145xf32, #tpu.memory_space<vmem>>, vector<25x145xf32>
    tpu.vector_store %arg6[%c0_2, %c0_3], %2 {strides = array<i32>} : memref<25x145xf32, #tpu.memory_space<vmem>>, vector<25x145xf32>,
    %c8 = arith.constant 8 : index
    %c128 = arith.constant 128 : index
    %4 = vector.load %arg6[%c8, %c128] : memref<25x145xf32, #tpu.memory_space<vmem>>, vector<16x16xf32>
    tpu.vector_store %arg6[%c8, %c128], %1 {strides = array<i32>} : memref<25x145xf32, #tpu.memory_space<vmem>>, vector<16x16xf32>,
    %c0_4 = arith.constant 0 : index
    %c0_5 = arith.constant 0 : index
    %c0_6 = arith.constant 0 : index
    %c0_7 = arith.constant 0 : index
    %5 = vector.load %arg3[%c0_4, %c0_5, %c0_6, %c0_7] : memref<1x1x1x16xf32, #tpu.memory_space<vmem>>, vector<1x1x1x16xf32>
    %6 = vector.shape_cast %5 : vector<1x1x1x16xf32> to vector<1x16xf32>
    %c7 = arith.constant 7 : index
    %c128_8 = arith.constant 128 : index
    %7 = vector.load %arg6[%c7, %c128_8] : memref<25x145xf32, #tpu.memory_space<vmem>>, vector<1x16xf32>
    tpu.vector_store %arg6[%c7, %c128_8], %6 {strides = array<i32>} : memref<25x145xf32, #tpu.memory_space<vmem>>, vector<1x16xf32>,
    %c0_9 = arith.constant 0 : index
    %c0_10 = arith.constant 0 : index
    %c0_11 = arith.constant 0 : index
    %c0_12 = arith.constant 0 : index
    %8 = vector.load %arg4[%c0_9, %c0_10, %c0_11, %c0_12] : memref<1x1x1x16xf32, #tpu.memory_space<vmem>>, vector<1x1x1x16xf32>
    %9 = vector.shape_cast %8 : vector<1x1x1x16xf32> to vector<1x16xf32>
    %c24 = arith.constant 24 : index
    %c128_13 = arith.constant 128 : index
    %10 = vector.load %arg6[%c24, %c128_13] : memref<25x145xf32, #tpu.memory_space<vmem>>, vector<1x16xf32>
    tpu.vector_store %arg6[%c24, %c128_13], %9 {strides = array<i32>} : memref<25x145xf32, #tpu.memory_space<vmem>>, vector<1x16xf32>,
    %c0_14 = arith.constant 0 : index
    %c0_15 = arith.constant 0 : index
    %11 = vector.load %arg6[%c0_14, %c0_15] : memref<25x145xf32, #tpu.memory_space<vmem>>, vector<25x145xf32>
    %12 = vector.extract_strided_slice %11 {offsets = [7, 0], sizes = [16, 145], strides = [1, 1]} : vector<25x145xf32> to vector<16x145xf32>
    %13 = vector.extract_strided_slice %11 {offsets = [8, 0], sizes = [16, 145], strides = [1, 1]} : vector<25x145xf32> to vector<16x145xf32>
    %14 = arith.maximumf %12, %13 : vector<16x145xf32>
    %15 = vector.extract_strided_slice %11 {offsets = [9, 0], sizes = [16, 145], strides = [1, 1]} : vector<25x145xf32> to vector<16x145xf32>
    %16 = arith.maximumf %14, %15 : vector<16x145xf32>
    %17 = vector.extract_strided_slice %16 {offsets = [0, 127], sizes = [16, 16], strides = [1, 1]} : vector<16x145xf32> to vector<16x16xf32>
    %18 = vector.extract_strided_slice %16 {offsets = [0, 128], sizes = [16, 16], strides = [1, 1]} : vector<16x145xf32> to vector<16x16xf32>
    %19 = arith.maximumf %17, %18 : vector<16x16xf32>
    %20 = vector.extract_strided_slice %16 {offsets = [0, 129], sizes = [16, 16], strides = [1, 1]} : vector<16x145xf32> to vector<16x16xf32>
    %21 = arith.maximumf %19, %20 : vector<16x16xf32>
    %c0_16 = arith.constant 0 : index
    %c0_17 = arith.constant 0 : index
    %c0_18 = arith.constant 0 : index
    %22 = vector.load %arg5[%c0_16, %c0_17, %c0_18] : memref<1x16x16xf32, #tpu.memory_space<vmem>>, vector<1x16x16xf32>
    %23 = vector.shape_cast %22 : vector<1x16x16xf32> to vector<16x16xf32>
    %24 = vector.shape_cast %21 : vector<16x16xf32> to vector<1x16x16xf32>
    tpu.vector_store %arg5[%c0_16, %c0_17, %c0_18], %24 {strides = array<i32>} : memref<1x16x16xf32, #tpu.memory_space<vmem>>, vector<1x16x16xf32>,
    return
  }
  func.func @transform_0(%arg0: i32, %arg1: i32) -> (i32, i32, i32) {
    %c0_i32 = arith.constant 0 : i32
    %c0_i32_0 = arith.constant 0 : i32
    return %arg0, %arg1, %c0_i32 : i32, i32, i32
  }
  func.func @transform_1(%arg0: i32, %arg1: i32) -> (i32, i32, i32, i32) {
    %c0_i32 = arith.constant 0 : i32
    %c0_i32_0 = arith.constant 0 : i32
    %c0_i32_1 = arith.constant 0 : i32
    return %arg0, %arg1, %c0_i32, %c0_i32_0 : i32, i32, i32, i32
  }
  func.func @transform_2(%arg0: i32, %arg1: i32) -> (i32, i32, i32, i32) {
    %c0_i32 = arith.constant 0 : i32
    %c0_i32_0 = arith.constant 0 : i32
    %c0_i32_1 = arith.constant 0 : i32
    return %arg0, %arg1, %c0_i32, %c0_i32_0 : i32, i32, i32, i32
  }
  func.func @transform_3(%arg0: i32, %arg1: i32) -> (i32, i32, i32) {
    %c0_i32 = arith.constant 0 : i32
    %c0_i32_0 = arith.constant 0 : i32
    return %arg0, %arg1, %c0_i32 : i32, i32, i32
  }
}

</mosaic_0001>

<llo_original>
// kernel: tpu_custom_call.1
$region0: #{tpu_custom_call.1}
  #allocation0 [shape = 'u32[]', space=smem, size = 0x4, offset = 0x4, fixed_abs, tag = 'smem constant byte address 0x4 - core index']
  #allocation1 [shape = 'u32[72,128]{1,0:T(1,128)}', space=vmem, size = 0x9000, scoped, tag = 'internal scratch']
  #allocation2 [shape = 'f32[25,145]{1,0:T(8,128)}', space=vmem, size = 0x8000, scoped, tag = 'scratch operand']
  %s0 = inlined_call_operand.hbm [shape: f32[2,16,16], index: 0, kind: input, shape index: {}]
  %s1 = inlined_call_operand.hbm [shape: f32[2,1,1,16], index: 1, kind: input, shape index: {}]
  %s2 = inlined_call_operand.hbm [shape: f32[2,1,1,16], index: 2, kind: input, shape index: {}]
  %s3 = inlined_call_operand.hbm [shape: f32[2,16,16], index: 3, kind: output, shape index: {}]
  %s4 = sld [smem:[#allocation0]]
  $region57: #{tpu_custom_call.1} parent=0
    _
  %s6 = ssub.s32 1, %s4
  %s7 = scalar_select 0, %s6, %s4
  $region1: #{tpu_custom_call.1} parent=0
    #allocation3 [shape = 'u8[16384]{0}', space=vmem, size = 0x4000, scoped, tag = 'input window, operand 0']
    #allocation4 [shape = 's32[2]{0}', space=sflag, size = 0x8, scoped, tag = 'scoped memory for tpu_custom_call.1']
    #allocation5 [shape = 's32[2]{0}', space=sflag, size = 0x8, scoped, tag = 'scoped memory for tpu_custom_call.1']
    #allocation6 [shape = 'u8[1024]{0}', space=vmem, size = 0x400, scoped, tag = 'input window, operand 1']
    #allocation7 [shape = 's32[2]{0}', space=sflag, size = 0x8, scoped, tag = 'scoped memory for tpu_custom_call.1']
    #allocation8 [shape = 'u8[1024]{0}', space=vmem, size = 0x400, scoped, tag = 'input window, operand 2']
    #allocation9 [shape = 'u8[16384]{0}', space=vmem, size = 0x4000, scoped, tag = 'output window, operand 0']
    %8 = vsyncpa [#allocation4], 0
    %s9 = scalar_lea.sflag [#allocation4], 1
    %10 = vsyncpa %s9, 0
    %11 = vsyncpa [#allocation7], 0
    %s12 = scalar_lea.sflag [#allocation7], 1
    %13 = vsyncpa %s12, 0
    %14 = vsyncpa [#allocation5], 0
    %s15 = scalar_lea.sflag [#allocation5], 1
    %16 = vsyncpa %s15, 0
    loop: start=0, step=1, limit=4
    $region2: #{tpu_custom_call.1} parent=1 // loop_pre_header
      _
    $region3: #{tpu_custom_call.1} parent=1 // loop_header
      %s18 = sphi 0, %s22
      %p19 = scmp.ge.s32.totalorder %s18, 4
      %s25 = sphi 0, %s37
      %s26 = sphi 0, %s33
      %s27 = sphi 0, %s25
      %s28 = sphi 0, %s26
      %s29 = sphi 0, %s27
      %s30 = sphi 0, %s28
      %s42 = sphi 0, %s44
      %s45 = sphi 0, %s42
      %s46 = sphi 0, %s45
      %s62 = sphi 0, %s46
      %s70 = sphi 0, %s72
      %s73 = sphi 0, %s70
      %s74 = sphi 0, %s73
      %s90 = sphi 0, %s74
      %s98 = sphi 0, %s100
      %s101 = sphi 0, %s98
      %s102 = sphi 0, %s101
      %s118 = sphi 0, %s102
      %s126 = sphi 0, %s128
      %s129 = sphi 0, %s126
      %s130 = sphi 0, %s129
      %s146 = sphi 0, %s130
    $region4: #{tpu_custom_call.1} parent=1 // loop_header_branch
      %21 = sbr.rel (%p19) target = $region8
    $region5: #{tpu_custom_call.1} parent=1 // loop_body
      %s23 = ssub.s32 %s18, 1
      %s24 = ssub.s32 %s18, 2
      %s31 = sadd.s32 1, %s26
      %p32 = scmp.ge.s32.totalorder %s31, 1
      %s33 = scalar_select %p32, 0, %s31
      %s34 = sadd.s32 1, %s25
      %s35 = scalar_select %p32, %s34, %s25
      %p36 = scmp.ge.s32.totalorder %s35, 2
      %s37 = scalar_select %p36, 0, %s35
      %s38 = ssub.s32 %s25, %s37
      %s39 = ssub.s32 %s26, %s33
      %s40 = sor.u32 %s38, %s39
      %p41 = scmp.eq.s32.totalorder %s40, 0
      %s43 = sadd.s32 %s42, 1
      %s44 = scalar_select %p41, %s42, %s43
      %p47 = pneg %p41
      %p48 = scmp.eq.s32.totalorder %s18, 1
      %p49 = por %p47, %p48
      %p50 = scmp.ne.s32.totalorder %s42, %s45
      %p51 = scmp.eq.s32.totalorder %s18, 0
      %p52 = por %p50, %p51
      %p53 = scmp.ne.s32.totalorder %s42, %s45
      %p54 = scmp.eq.s32.totalorder %s23, 1
      %p55 = por %p53, %p54
      %p56 = scmp.ne.s32.totalorder %s45, %s46
      %p57 = scmp.eq.s32.totalorder %s23, 0
      %p58 = por %p56, %p57
      %p59 = scmp.ne.s32.totalorder %s45, %s46
      %p60 = scmp.eq.s32.totalorder %s24, 1
      %p61 = por %p59, %p60
      %p63 = scmp.ne.s32.totalorder %s46, %s62
      %p64 = scmp.eq.s32.totalorder %s24, 0
      %p65 = por %p63, %p64
      %s66 = ssub.s32 %s25, %s37
      %s67 = ssub.s32 %s26, %s33
      %s68 = sor.u32 %s66, %s67
      %p69 = scmp.eq.s32.totalorder %s68, 0
      %s71 = sadd.s32 %s70, 1
      %s72 = scalar_select %p69, %s70, %s71
      %p75 = pneg %p69
      %p76 = scmp.eq.s32.totalorder %s18, 1
      %p77 = por %p75, %p76
      %p78 = scmp.ne.s32.totalorder %s70, %s73
      %p79 = scmp.eq.s32.totalorder %s18, 0
      %p80 = por %p78, %p79
      %p81 = scmp.ne.s32.totalorder %s70, %s73
      %p82 = scmp.eq.s32.totalorder %s23, 1
      %p83 = por %p81, %p82
      %p84 = scmp.ne.s32.totalorder %s73, %s74
      %p85 = scmp.eq.s32.totalorder %s23, 0
      %p86 = por %p84, %p85
      %p87 = scmp.ne.s32.totalorder %s73, %s74
      %p88 = scmp.eq.s32.totalorder %s24, 1
      %p89 = por %p87, %p88
      %p91 = scmp.ne.s32.totalorder %s74, %s90
      %p92 = scmp.eq.s32.totalorder %s24, 0
      %p93 = por %p91, %p92
      %s94 = ssub.s32 %s25, %s37
      %s95 = ssub.s32 %s26, %s33
      %s96 = sor.u32 %s94, %s95
      %p97 = scmp.eq.s32.totalorder %s96, 0
      %s99 = sadd.s32 %s98, 1
      %s100 = scalar_select %p97, %s98, %s99
      %p103 = pneg %p97
      %p104 = scmp.eq.s32.totalorder %s18, 1
      %p105 = por %p103, %p104
      %p106 = scmp.ne.s32.totalorder %s98, %s101
      %p107 = scmp.eq.s32.totalorder %s18, 0
      %p108 = por %p106, %p107
      %p109 = scmp.ne.s32.totalorder %s98, %s101
      %p110 = scmp.eq.s32.totalorder %s23, 1
      %p111 = por %p109, %p110
      %p112 = scmp.ne.s32.totalorder %s101, %s102
      %p113 = scmp.eq.s32.totalorder %s23, 0
      %p114 = por %p112, %p113
      %p115 = scmp.ne.s32.totalorder %s101, %s102
      %p116 = scmp.eq.s32.totalorder %s24, 1
      %p117 = por %p115, %p116
      %p119 = scmp.ne.s32.totalorder %s102, %s118
      %p120 = scmp.eq.s32.totalorder %s24, 0
      %p121 = por %p119, %p120
      %s122 = ssub.s32 %s25, %s37
      %s123 = ssub.s32 %s26, %s33
      %s124 = sor.u32 %s122, %s123
      %p125 = scmp.eq.s32.totalorder %s124, 0
      %s127 = sadd.s32 %s126, 1
      %s128 = scalar_select %p125, %s126, %s127
      %p131 = pneg %p125
      %p132 = scmp.eq.s32.totalorder %s18, 1
      %p133 = por %p131, %p132
      %p134 = scmp.ne.s32.totalorder %s126, %s129
      %p135 = scmp.eq.s32.totalorder %s18, 0
      %p136 = por %p134, %p135
      %p137 = scmp.ne.s32.totalorder %s126, %s129
      %p138 = scmp.eq.s32.totalorder %s23, 1
      %p139 = por %p137, %p138
      %p140 = scmp.ne.s32.totalorder %s129, %s130
      %p141 = scmp.eq.s32.totalorder %s23, 0
      %p142 = por %p140, %p141
      %p143 = scmp.ne.s32.totalorder %s129, %s130
      %p144 = scmp.eq.s32.totalorder %s24, 1
      %p145 = por %p143, %p144
      %p147 = scmp.ne.s32.totalorder %s130, %s146
      %p148 = scmp.eq.s32.totalorder %s24, 0
      %p149 = por %p147, %p148
      %p150 = scmp.le.s32.totalorder 1, %s18
      %p151 = scmp.lt.s32.totalorder %s18, 3
      %p152 = pnand %p150, %p151
      %p153 = pneg %p152
      // Predicated region
      $region9: #{tpu_custom_call.1} parent=5 // pred_check
        _
      $region10: #{tpu_custom_call.1} parent=5 // pred_check_branch
        %155 = sbr.rel (%p152) target = $region12
      $region11: #{tpu_custom_call.1} parent=5 // pred_region
        %s156 = ssub.s32 %s18, 1
      $region12: #{tpu_custom_call.1} parent=5 // pred_fallthru
        _
      %p157 = scmp.lt.s32.totalorder %s18, 2
      // Predicated region
      $region13: #{tpu_custom_call.1} parent=5 // pred_check
        %p158 = pneg %p157
      $region14: #{tpu_custom_call.1} parent=5 // pred_check_branch
        %160 = sbr.rel (%p158) target = $region16
      $region15: #{tpu_custom_call.1} parent=5 // pred_region
        // Predicated region
        $region17: #{tpu_custom_call.1} parent=15 // pred_check
          %p161 = pneg %p52
        $region18: #{tpu_custom_call.1} parent=15 // pred_check_branch
          %163 = sbr.rel (%p161) target = $region20
        $region19: #{tpu_custom_call.1} parent=15 // pred_region
          %s164 = sand.u32 %s42, 1
          %s165 = scalar_lea.sflag [#allocation4], %s164
          %s166 = sand.u32 %s42, 1
          %s167 = smul.addr %s166, 16
          %s168 = scalar_lea.vmem [#allocation3], %s167
          %s169 = smul.u32 2, %s26
          %171 = vsyncadd %s165, 0
          %s172 = smul.addr %s25, 2
          %s173 = sadd.s32 %s169, %s172
          %s174 = smul.addr %s173, 8
          %s175 = scalar_lea.hbm %s0, %s174
          %s176 = sshll.u32 %s175, 4
          %s177 = int_to_ptr.hbm [resolvable:$true] %s176
          %s178 = sshll.u32 %s168, 4
          %s179 = int_to_ptr.vmem [resolvable:$true] %s178
          %184 = dma.hbm_to_vmem [thread:$0]  %s177, 256, %s179, %s165, 128, 128, 8
        $region20: #{tpu_custom_call.1} parent=15 // pred_fallthru
          _
        // Predicated region
        $region21: #{tpu_custom_call.1} parent=15 // pred_check
          %p185 = pneg %p80
        $region22: #{tpu_custom_call.1} parent=15 // pred_check_branch
          %187 = sbr.rel (%p185) target = $region24
        $region23: #{tpu_custom_call.1} parent=15 // pred_region
          %s188 = sand.u32 %s18, 1
          %s189 = scalar_lea.sflag [#allocation7], %s188
          %s190 = sand.u32 %s70, 1
          %s191 = scalar_lea.vmem [#allocation6], %s190
          %193 = vsyncadd %s189, 0
          %s194 = sadd.s32 %s26, %s25
          %s195 = scalar_lea.hbm %s1, %s194
          %s197 = sshll.u32 %s195, 4
          %s198 = int_to_ptr.hbm [resolvable:$true] %s197
          %s199 = sshll.u32 %s191, 4
          %s200 = int_to_ptr.vmem [resolvable:$true] %s199
          %202 = dma.hbm_to_vmem [thread:$0]  %s198, 16, %s200, %s189
        $region24: #{tpu_custom_call.1} parent=15 // pred_fallthru
          _
        // Predicated region
        $region25: #{tpu_custom_call.1} parent=15 // pred_check
          %p203 = pneg %p108
        $region26: #{tpu_custom_call.1} parent=15 // pred_check_branch
          %205 = sbr.rel (%p203) target = $region28
        $region27: #{tpu_custom_call.1} parent=15 // pred_region
          %s206 = sand.u32 %s18, 1
          %s207 = scalar_lea.sflag [#allocation7], %s206
          %s208 = sand.u32 %s98, 1
          %s209 = scalar_lea.vmem [#allocation8], %s208
          %211 = vsyncadd %s207, 0
          %s212 = sadd.s32 %s26, %s25
          %s213 = scalar_lea.hbm %s2, %s212
          %s215 = sshll.u32 %s213, 4
          %s216 = int_to_ptr.hbm [resolvable:$true] %s215
          %s217 = sshll.u32 %s209, 4
          %s218 = int_to_ptr.vmem [resolvable:$true] %s217
          %220 = dma.hbm_to_vmem [thread:$0]  %s216, 16, %s218, %s207
        $region28: #{tpu_custom_call.1} parent=15 // pred_fallthru
          _
      $region16: #{tpu_custom_call.1} parent=5 // pred_fallthru
        _
      %p221 = scmp.le.s32.totalorder 1, %s18
      %p222 = scmp.lt.s32.totalorder %s18, 3
      %p223 = pnand %p221, %p222
      %p224 = pneg %p223
      // Predicated region
      $region29: #{tpu_custom_call.1} parent=5 // pred_check
        _
      $region30: #{tpu_custom_call.1} parent=5 // pred_check_branch
        %226 = sbr.rel (%p223) target = $region32
      $region31: #{tpu_custom_call.1} parent=5 // pred_region
        %s227 = ssub.s32 %s18, 1
        %s228 = sand.u32 %s45, 1
        %s229 = scalar_lea.sflag [#allocation4], %s228
        %s230 = sand.u32 %s45, 1
        %s231 = smul.addr %s230, 16
        %s232 = scalar_lea.vmem [#allocation3], %s231
        // Predicated region
        $region33: #{tpu_custom_call.1} parent=31 // pred_check
          %p233 = pneg %p58
        $region34: #{tpu_custom_call.1} parent=31 // pred_check_branch
          %235 = sbr.rel (%p233) target = $region36
        $region35: #{tpu_custom_call.1} parent=31 // pred_region
          %237 = dma.done %s229, 256
        $region36: #{tpu_custom_call.1} parent=31 // pred_fallthru
          _
        %s238 = sand.u32 %s23, 1
        %s239 = scalar_lea.sflag [#allocation7], %s238
        %s240 = sand.u32 %s73, 1
        %s241 = scalar_lea.vmem [#allocation6], %s240
        // Predicated region
        $region37: #{tpu_custom_call.1} parent=31 // pred_check
          %p242 = pneg %p86
        $region38: #{tpu_custom_call.1} parent=31 // pred_check_branch
          %244 = sbr.rel (%p242) target = $region40
        $region39: #{tpu_custom_call.1} parent=31 // pred_region
          %246 = dma.done %s239, 16
        $region40: #{tpu_custom_call.1} parent=31 // pred_fallthru
          _
        %s247 = sand.u32 %s23, 1
        %s248 = scalar_lea.sflag [#allocation7], %s247
        %s249 = sand.u32 %s101, 1
        %s250 = scalar_lea.vmem [#allocation8], %s249
        // Predicated region
        $region41: #{tpu_custom_call.1} parent=31 // pred_check
          %p251 = pneg %p114
        $region42: #{tpu_custom_call.1} parent=31 // pred_check_branch
          %253 = sbr.rel (%p251) target = $region44
        $region43: #{tpu_custom_call.1} parent=31 // pred_region
          %255 = dma.done %s248, 16
        $region44: #{tpu_custom_call.1} parent=31 // pred_fallthru
          _
        %s256 = sand.u32 %s45, 1
        %s257 = scalar_lea.sflag [#allocation4], %s256
        %s258 = sand.u32 %s45, 1
        %s259 = smul.addr %s258, 16
        %s260 = scalar_lea.vmem [#allocation3], %s259
        %p261 = pneg %p58
        %p262 = pneg %p55
        %s263 = sand.u32 %s23, 1
        %s264 = scalar_lea.sflag [#allocation7], %s263
        %s265 = sand.u32 %s73, 1
        %s266 = scalar_lea.vmem [#allocation6], %s265
        %p267 = pneg %p86
        %p268 = pneg %p83
        %s269 = sand.u32 %s23, 1
        %s270 = scalar_lea.sflag [#allocation7], %s269
        %s271 = sand.u32 %s101, 1
        %s272 = scalar_lea.vmem [#allocation8], %s271
        %p273 = pneg %p114
        %p274 = pneg %p111
        %p275 = pneg %p142
        %p276 = pneg %p139
        %s277 = sand.u32 %s129, 1
        %s278 = scalar_lea.sflag [#allocation5], %s277
        %s279 = sand.u32 %s129, 1
        %s280 = smul.addr %s279, 16
        %s281 = scalar_lea.vmem [#allocation9], %s280
        %s282 = smul.u32 2, %s28
        %s283 = smul.u32 2, %s28
        %v284 = vld [vmem:[%s232] sm:$0xff]
        %v285 = vld [vmem:[%s232 + $0x8] sm:$0xff]
        %286 = vst [vmem:[#allocation2] sm:$0xff] -3.4028235e+38
        %vm287 = vcmask 138240
        %288 = vst.msk [vmem:[#allocation2 + $0x8] sm:$0xff] %vm287, -3.4028235e+38
        %289 = vst [vmem:[#allocation2 + $0x10] sm:$0xff] -3.4028235e+38
        %290 = vst.msk [vmem:[#allocation2 + $0x18] sm:$0xff] %vm287, -3.4028235e+38
        %291 = vst [vmem:[#allocation2 + $0x20] sm:$0xff] -3.4028235e+38
        %292 = vst.msk [vmem:[#allocation2 + $0x28] sm:$0xff] %vm287, -3.4028235e+38
        %293 = vst [vmem:[#allocation2 + $0x30] sm:$0x1] -3.4028235e+38
        %vm294 = vcmask 131072
        %295 = vst.msk [vmem:[#allocation2 + $0x38] sm:$0x1] %vm294, -3.4028235e+38
        %vm296 = vcmask 130048
        %297 = vst.msk [vmem:[#allocation2 + $0x18] sm:$0xff] %vm296, %v284
        %298 = vst.msk [vmem:[#allocation2 + $0x28] sm:$0xff] %vm296, %v285
        %v299 = vld [vmem:[%s241] sm:$0x1]
        %vm300 = vcmask 122880
        %301 = vst.msk [vmem:[#allocation2 + $0xf] sm:$0x1] %vm300, %v299
        %v302 = vld [vmem:[%s250] sm:$0x1]
        %303 = vst.msk [vmem:[#allocation2 + $0x38] sm:$0x1] %vm300, %v302
        %v304 = vld [vmem:[#allocation2] sm:$0xff]
        %v305 = vld [vmem:[#allocation2 + $0x8] sm:$0xff]
        %v306 = vld [vmem:[#allocation2 + $0x10] sm:$0xff]
        %v307 = vld [vmem:[#allocation2 + $0x18] sm:$0xff]
        %v308 = vld [vmem:[#allocation2 + $0x20] sm:$0xff]
        %v309 = vld [vmem:[#allocation2 + $0x28] sm:$0xff]
        %v310 = vld [vmem:[#allocation2 + $0x30] sm:$0x1]
        %v311 = vld [vmem:[#allocation2 + $0x38] sm:$0x1]
        %vm316 = vcmask 1046528
        %v317 = vrot.slane %v306, 1
        %v318 = vrot.slane %v307, 1
        %v319 = vrot.slane %v308, 1
        %v320 = vsel %vm316, %v317, %v319
        %v321 = vrot.slane %v309, 1
        %v322 = vsel %vm316, %v318, %v321
        %v329 = vmax.f32 %v304, %v317
        %v330 = vmax.f32 %v305, %v318
        %v331 = vmax.f32 %v306, %v320
        %v332 = vmax.f32 %v307, %v322
        %v333 = vmax.f32 %v308, %v319
        %v334 = vmax.f32 %v309, %v321
        %vm337 = vcmask 1045504
        %v338 = vrot.slane %v306, 2
        %v339 = vrot.slane %v307, 2
        %v340 = vrot.slane %v308, 2
        %v341 = vsel %vm337, %v338, %v340
        %v342 = vrot.slane %v309, 2
        %v343 = vsel %vm337, %v339, %v342
        %v344 = vrot.slane %v310, 2
        %v345 = vsel %vm337, %v340, %v344
        %v346 = vrot.slane %v311, 2
        %v347 = vsel %vm337, %v342, %v346
        %v354 = vmax.f32 %v329, %v338
        %v355 = vmax.f32 %v330, %v339
        %v356 = vmax.f32 %v331, %v341
        %v357 = vmax.f32 %v332, %v343
        %v358 = vmax.f32 %v333, %v345
        %v359 = vmax.f32 %v334, %v347
        %363 = vrot.lane.b32.xlu0 %v355, 127
        %v364 = vpop.permute.xlu0 %363
        %365 = vrot.lane.b32.xlu0 %v357, 127
        %v366 = vpop.permute.xlu0 %365
        %367 = vrot.lane.b32.xlu0 %v359, 127
        %v368 = vpop.permute.xlu0 %367
        %v372 = vmax.f32 %v354, %v364
        %v373 = vmax.f32 %v355, %v364
        %v374 = vmax.f32 %v356, %v366
        %v375 = vmax.f32 %v357, %v366
        %v376 = vmax.f32 %v358, %v368
        %v377 = vmax.f32 %v359, %v368
        %378 = vrot.lane.b32.xlu0 %v355, 126
        %v379 = vpop.permute.xlu0 %378
        %380 = vrot.lane.b32.xlu0 %v357, 126
        %v381 = vpop.permute.xlu0 %380
        %382 = vrot.lane.b32.xlu0 %v359, 126
        %v383 = vpop.permute.xlu0 %382
        %v387 = vmax.f32 %v372, %v379
        %v388 = vmax.f32 %v373, %v379
        %v389 = vmax.f32 %v374, %v381
        %v390 = vmax.f32 %v375, %v381
        %v391 = vmax.f32 %v376, %v383
        %v392 = vmax.f32 %v377, %v383
        %399 = vrot.lane.b32.xlu0 %v387, 1
        %v400 = vpop.permute.xlu0 %399
        %401 = vrot.lane.b32.xlu0 %v388, 1
        %v402 = vpop.permute.xlu0 %401
        %403 = vrot.lane.b32.xlu0 %v389, 1
        %v404 = vpop.permute.xlu0 %403
        %405 = vrot.lane.b32.xlu0 %v390, 1
        %v406 = vpop.permute.xlu0 %405
        %407 = vrot.lane.b32.xlu0 %v391, 1
        %v408 = vpop.permute.xlu0 %407
        %409 = vrot.lane.b32.xlu0 %v392, 1
        %v410 = vpop.permute.xlu0 %409
        %vm411 = vcmask 7168
        %v412 = vsel %vm411, %v400, %v402
        %v413 = vsel %vm411, %v404, %v406
        %v414 = vsel %vm411, %v408, %v410
        %vm418 = vcmask 130055
        %419 = vst.msk [vmem:[%s281 - $0x7] sm:$0x80] %vm418, %v412
        %420 = vst.msk [vmem:[%s281 + $0x1] sm:$0xff] %vm296, %v413
        %vm421 = vcmask 129024
        %422 = vst.msk [vmem:[%s281 + $0x9] sm:$0x7f] %vm421, %v414
        %s423 = sand.u32 %s129, 1
        %s424 = scalar_lea.sflag [#allocation5], %s423
        %s425 = sand.u32 %s129, 1
        %s426 = smul.addr %s425, 16
        %s427 = scalar_lea.vmem [#allocation9], %s426
        // Predicated region
        $region45: #{tpu_custom_call.1} parent=31 // pred_check
          %p428 = pneg %p139
        $region46: #{tpu_custom_call.1} parent=31 // pred_check_branch
          %430 = sbr.rel (%p428) target = $region48
        $region47: #{tpu_custom_call.1} parent=31 // pred_region
          %s431 = smul.u32 2, %s28
          %433 = vsyncadd %s424, 0
          %s434 = smul.addr %s27, 2
          %s435 = sadd.s32 %s431, %s434
          %s436 = smul.addr %s435, 8
          %s437 = scalar_lea.hbm %s3, %s436
          %s438 = sshll.u32 %s427, 4
          %s439 = int_to_ptr.vmem [resolvable:$true] %s438
          %s440 = sshll.u32 %s437, 4
          %s441 = int_to_ptr.hbm [resolvable:$true] %s440
          %446 = dma.vmem_to_hbm [thread:$0]  %s439, 256, %s441, %s424, 128, 128, 8
        $region48: #{tpu_custom_call.1} parent=31 // pred_fallthru
          _
      $region32: #{tpu_custom_call.1} parent=5 // pred_fallthru
        _
      %p447 = scmp.le.s32.totalorder 2, %s18
      // Predicated region
      $region49: #{tpu_custom_call.1} parent=5 // pred_check
        %p448 = pneg %p447
      $region50: #{tpu_custom_call.1} parent=5 // pred_check_branch
        %450 = sbr.rel (%p448) target = $region52
      $region51: #{tpu_custom_call.1} parent=5 // pred_region
        %s451 = ssub.s32 %s18, 2
        // Predicated region
        $region53: #{tpu_custom_call.1} parent=51 // pred_check
          %p452 = pneg %p145
        $region54: #{tpu_custom_call.1} parent=51 // pred_check_branch
          %454 = sbr.rel (%p452) target = $region56
        $region55: #{tpu_custom_call.1} parent=51 // pred_region
          %s455 = sand.u32 %s130, 1
          %s456 = scalar_lea.sflag [#allocation5], %s455
          %s457 = sand.u32 %s130, 1
          %s458 = smul.addr %s457, 16
          %s459 = scalar_lea.vmem [#allocation9], %s458
          %461 = dma.done %s456, 256
        $region56: #{tpu_custom_call.1} parent=51 // pred_fallthru
          _
      $region52: #{tpu_custom_call.1} parent=5 // pred_fallthru
        _
    $region6: #{tpu_custom_call.1} parent=1 // loop_footer
      %s22 = sadd.s32 1, %s18
    $region7: #{tpu_custom_call.1} parent=1 // loop_footer_branch
      %17 = sbr.rel target = $region3
    $region8: #{tpu_custom_call.1} parent=1 // loop_exit
      _
    %462 = vsyncpa [#allocation4], 1
    %s463 = scalar_lea.sflag [#allocation4], 1
    %464 = vsyncpa %s463, 1
    %465 = vsyncpa [#allocation7], 1
    %s466 = scalar_lea.sflag [#allocation7], 1
    %467 = vsyncpa %s466, 1
    %468 = vsyncpa [#allocation5], 1
    %s469 = scalar_lea.sflag [#allocation5], 1
    %470 = vsyncpa %s469, 1

</llo_original>
